<compile_context>
chip_gen: v7x
topology: tpu7x:2x2x1
jax: 0.10.0
libtpu: 0.0.40
codegen_flags: <defaults>
</compile_context>

<pallas_src>
import functools

import jax
import jax.numpy as jnp
from jax.experimental import pallas as pl
from jax.experimental.pallas import tpu as pltpu


def _round_up(n: int, m: int) -> int:
    return ((n + m - 1) // m) * m


def _vmem_limit_bytes():
    """~85% of this chip's physical VMEM; None -> compiler default if unknown."""
    try:
        cap = pltpu.get_tpu_info().vmem_capacity_bytes
    except Exception:
        return None
    return int(cap * 0.85)


# --------------------------------------------------------------------------
# Kernel
# --------------------------------------------------------------------------
def multiply_kernel(x_ref, w_ref, b_ref, o_ref, acc_ref, *, num_branches, tn):
    """Grid = (out_tile j, batch_tile i, contraction k) with k innermost.

    x_ref:   [TB, TK]        (compute dtype)
    w_ref:   [TK, K * TN]    (compute dtype) - all K branches of out-tile j
    b_ref:   [1, K * TN]     (f32, concatenated biases for out-tile j)
    o_ref:   [TB, TN]
    acc_ref: [TB, K * TN]    (f32 scratch accumulator, bias folded into init)
    """
    k = pl.program_id(2)

    @pl.when(k == 0)
    def _():
        # Fold the bias into the accumulator init (no separate add pass).
        acc_ref[...] = jnp.broadcast_to(b_ref[...], acc_ref.shape)

    acc_ref[...] += jnp.dot(x_ref[...], w_ref[...],
                            preferred_element_type=jnp.float32)

    @pl.when(k == pl.num_programs(2) - 1)
    def _():
        # Incremental K-way product over lane-aligned TN-wide slices of the
        # accumulator: caps live f32 at ~2x(TB, TN) instead of (TB, K*TN).
        prod = acc_ref[:, 0:tn]
        for i in range(1, num_branches):
            prod = prod * acc_ref[:, i * tn:(i + 1) * tn]
        o_ref[...] = prod.astype(o_ref.dtype)


# --------------------------------------------------------------------------
# One-time parameter packing ("module init") - hoisted out of the forward.
# --------------------------------------------------------------------------
def pack_multiply_params(w, b, *, compute_dtype=jnp.bfloat16,
                         out_tile=512, k_tile=2048):
    """w: [K, D_in, D_out]; b: [K, D_out].  Returns (w_packed, b_packed, meta)."""
    K, D_in, D_out = w.shape
    out_tile = _round_up(out_tile, 128)
    k_tile = _round_up(k_tile, 128)

    # TN chosen so the D_out padding stays < 128 columns.
    n_tiles = max(1, -(-D_out // out_tile))
    TN = _round_up(-(-D_out // n_tiles), 128)
    D_out_p = n_tiles * TN
    grid_n = n_tiles

    # Contraction tile (bounds VMEM independent of D_in).
    TK = min(_round_up(D_in, 128), k_tile)
    D_in_p = _round_up(D_in, TK)

    # Pack as [D_in_p, grid_n, K, TN] -> output tile j gets one contiguous
    # [D_in_p, K*TN] slab holding all K branches for that tile.
    w_packed = (jnp.zeros((K, D_in_p, D_out_p), compute_dtype)
                .at[:, :D_in, :D_out].set(w.astype(compute_dtype))
                .reshape(K, D_in_p, grid_n, TN)
                .transpose(1, 2, 0, 3)
                .reshape(D_in_p, grid_n * K * TN))
    b_packed = (jnp.zeros((K, D_out_p), jnp.float32)
                .at[:, :D_out].set(b.astype(jnp.float32))
                .reshape(K, grid_n, TN)
                .transpose(1, 0, 2)
                .reshape(1, grid_n * K * TN))

    meta = dict(K=K, D_in=D_in, D_out=D_out, D_in_p=D_in_p, D_out_p=D_out_p,
                TN=TN, TK=TK, grid_n=grid_n,
                compute_dtype=jnp.dtype(compute_dtype))
    return w_packed, b_packed, meta


# --------------------------------------------------------------------------
# Forward
# --------------------------------------------------------------------------
def multiply_forward(x, w_packed, b_packed, meta, *, batch_tile=512):
    """x: [B, D_in] -> [B, D_out] = prod_k (x @ W_k + b_k)."""
    B, D_in = x.shape
    assert D_in == meta["D_in"]
    K, TN, TK = meta["K"], meta["TN"], meta["TK"]
    D_in_p, D_out_p, grid_n = meta["D_in_p"], meta["D_out_p"], meta["grid_n"]
    D_out = meta["D_out"]
    compute_dtype = meta["compute_dtype"]
    out_dtype = x.dtype

    grid_k = D_in_p // TK

    sub = 8 if compute_dtype.itemsize == 4 else 16      # sublane quantum
    batch_tile = _round_up(batch_tile, 128)              # v5e: keep M in 128s
    TB = min(_round_up(B, sub), batch_tile)
    B_p = _round_up(B, TB)
    grid_b = B_p // TB

    # v7x has 2 TensorCores: guarantee >= 2 parallel blocks when possible.
    if grid_n == 1 and grid_b == 1 and B_p >= 2 * sub:
        TB = _round_up(-(-B_p // 2), sub)
        B_p = _round_up(B, TB)
        grid_b = B_p // TB

    # Activation padding (per-call, unavoidable; weights were packed once).
    x_p = jnp.zeros((B_p, D_in_p), compute_dtype).at[:B, :D_in].set(
        x.astype(compute_dtype))

    kernel = functools.partial(multiply_kernel, num_branches=K, tn=TN)

    x_bytes = x_p.size * x_p.dtype.itemsize
    w_bytes = w_packed.size * w_packed.dtype.itemsize
    b_bytes = b_packed.size * b_packed.dtype.itemsize
    o_bytes = B_p * D_out_p * jnp.dtype(out_dtype).itemsize
    cost = pl.CostEstimate(
        flops=2 * B_p * D_in_p * grid_n * K * TN + (K - 1) * B_p * D_out_p,
        transcendentals=0,
        # x is re-streamed once per output tile; weights once per batch tile.
        bytes_accessed=grid_n * x_bytes + grid_b * w_bytes + b_bytes + o_bytes,
    )

    out_padded = pl.pallas_call(
        kernel,
        out_shape=jax.ShapeDtypeStruct((B_p, D_out_p), out_dtype),
        grid_spec=pltpu.PrefetchScalarGridSpec(
            num_scalar_prefetch=0,
            # j (output tiles) outer, i (batch tiles) middle, k (D_in) inner:
            # the output block index is constant along k -> VMEM-resident
            # accumulator; k is the streaming/reduction axis.
            grid=(grid_n, grid_b, grid_k),
            in_specs=[
                pl.BlockSpec((TB, TK), lambda j, i, k: (i, k)),
                pl.BlockSpec((TK, K * TN), lambda j, i, k: (k, j)),
                pl.BlockSpec((1, K * TN), lambda j, i, k: (0, j)),
            ],
            out_specs=pl.BlockSpec((TB, TN), lambda j, i, k: (i, j)),
            scratch_shapes=[pltpu.VMEM((TB, K * TN), jnp.float32)],
        ),
        compiler_params=pltpu.CompilerParams(
            dimension_semantics=("parallel", "parallel", "arbitrary"),
            vmem_limit_bytes=_vmem_limit_bytes(),
        ),
        cost_estimate=cost,
    )(x_p, w_packed, b_packed)

    return out_padded[:B, :D_out]


def multiply_reference(x, w, b):
    """Pure-JAX f32 reference matching torch.stack([...], -1).prod(-1)."""
    ys = jnp.stack([x @ w[k] + b[k] for k in range(w.shape[0])], axis=-1)
    return jnp.prod(ys, axis=-1)


if __name__ == "__main__":
    key = jax.random.PRNGKey(0)
    kx, kw, kb = jax.random.split(key, 3)

    B, D_in, D_out, K = 8, 32, 32, 3   # batch=8, hidden=32, 3 Linear branches

    x = jax.random.normal(kx, (B, D_in), dtype=jnp.float32)
    # "Linear" parameters per branch, pre-transposed to [D_in, D_out].
    w = jax.random.normal(kw, (K, D_in, D_out), dtype=jnp.float32) * 0.1
    b = jax.random.normal(kb, (K, D_out), dtype=jnp.float32) * 0.1

    ref = multiply_reference(x, w, b)

    # Default bf16-MXU path (weights packed ONCE, reused across calls).
    w_bf, b_bf, meta_bf = pack_multiply_params(w, b, compute_dtype=jnp.bfloat16)
    out_bf = multiply_forward(x, w_bf, b_bf, meta_bf)
    jax.block_until_ready(out_bf)
    assert out_bf.shape == (B, D_out)
    assert jnp.allclose(out_bf, ref, atol=5e-2, rtol=5e-2), float(
        jnp.max(jnp.abs(out_bf - ref)))

    # Accuracy-sensitive f32 path (bf16 error compounds over the K-way product).
    w_f32, b_f32, meta_f32 = pack_multiply_params(w, b, compute_dtype=jnp.float32)
    out_f32 = multiply_forward(x, w_f32, b_f32, meta_f32)
    jax.block_until_ready(out_f32)
    assert jnp.allclose(out_f32, ref, atol=1e-4, rtol=1e-4), float(
        jnp.max(jnp.abs(out_f32 - ref)))

    # TODO(synk): Multiply accepts arbitrary sub-modules; only the Linear-branch
    # instantiation is lowered here (general nn.Modules have no static kernel form).
    print("KERNEL_OK")
</pallas_src>

<mosaic_0001>
module attributes {stable_mosaic.version = 11 : i64} {
  func.func @multiply_kernel(%arg0: i32, %arg1: i32, %arg2: i32, %arg3: memref<16x128xbf16, #tpu.memory_space<vmem>>, %arg4: memref<128x384xbf16, #tpu.memory_space<vmem>>, %arg5: memref<1x384xf32, #tpu.memory_space<vmem>>, %arg6: memref<16x128xf32, #tpu.memory_space<vmem>>, %arg7: memref<16x384xf32, #tpu.memory_space<vmem>>) attributes {dimension_semantics = [#tpu.dimension_semantics<parallel>, #tpu.dimension_semantics<parallel>, #tpu.dimension_semantics<arbitrary>], iteration_bounds = array<i64: 1, 1, 1>, scalar_prefetch = 0 : i64, scratch_operands = 1 : i64, tpu.core_type = #tpu.core_type<tc>, window_params = [{transform_indices = @transform_0, window_bounds = array<i64: 16, 128>}, {transform_indices = @transform_1, window_bounds = array<i64: 128, 384>}, {transform_indices = @transform_2, window_bounds = array<i64: 1, 384>}, {transform_indices = @transform_3, window_bounds = array<i64: 16, 128>}]} {
    %c0_i32 = arith.constant 0 : i32
    %0 = arith.cmpi eq, %arg2, %c0_i32 : i32
    %1 = arith.extui %0 : i1 to i32
    %c0_i32_0 = arith.constant 0 : i32
    %2 = arith.cmpi ne, %1, %c0_i32_0 : i32
    scf.if %2 {
      %c0_10 = arith.constant 0 : index
      %c0_11 = arith.constant 0 : index
      %12 = vector.load %arg5[%c0_10, %c0_11] : memref<1x384xf32, #tpu.memory_space<vmem>>, vector<1x384xf32>
      %13 = vector.shape_cast %12 : vector<1x384xf32> to vector<1x384xf32>
      %14 = vector.broadcast %13 : vector<1x384xf32> to vector<16x384xf32>
      %c0_12 = arith.constant 0 : index
      %c0_13 = arith.constant 0 : index
      %15 = vector.load %arg7[%c0_12, %c0_13] : memref<16x384xf32, #tpu.memory_space<vmem>>, vector<16x384xf32>
      tpu.vector_store %arg7[%c0_12, %c0_13], %14 {strides = array<i32>} : memref<16x384xf32, #tpu.memory_space<vmem>>, vector<16x384xf32>,
    } else {
    }
    %c0 = arith.constant 0 : index
    %c0_1 = arith.constant 0 : index
    %3 = vector.load %arg7[%c0, %c0_1] : memref<16x384xf32, #tpu.memory_space<vmem>>, vector<16x384xf32>
    %c0_2 = arith.constant 0 : index
    %c0_3 = arith.constant 0 : index
    %4 = vector.load %arg3[%c0_2, %c0_3] : memref<16x128xbf16, #tpu.memory_space<vmem>>, vector<16x128xbf16>
    %c0_4 = arith.constant 0 : index
    %c0_5 = arith.constant 0 : index
    %5 = vector.load %arg4[%c0_4, %c0_5] : memref<128x384xbf16, #tpu.memory_space<vmem>>, vector<128x384xbf16>
    %cst = arith.constant dense<0.000000e+00> : vector<16x384xf32>
    %6 = tpu.matmul %4, %5, %cst {dimension_numbers = #tpu.dot_dimension_numbers<[1], [0], [0], [1], [0, 0, 1, 1], [], []>} : vector<16x128xbf16>, vector<128x384xbf16>, vector<16x384xf32> -> vector<16x384xf32>
    %7 = arith.addf %3, %6 : vector<16x384xf32>
    %c0_6 = arith.constant 0 : index
    %c0_7 = arith.constant 0 : index
    %8 = vector.load %arg7[%c0_6, %c0_7] : memref<16x384xf32, #tpu.memory_space<vmem>>, vector<16x384xf32>
    tpu.vector_store %arg7[%c0_6, %c0_7], %7 {strides = array<i32>} : memref<16x384xf32, #tpu.memory_space<vmem>>, vector<16x384xf32>,
    %c0_i32_8 = arith.constant 0 : i32
    %9 = arith.cmpi eq, %arg2, %c0_i32_8 : i32
    %10 = arith.extui %9 : i1 to i32
    %c0_i32_9 = arith.constant 0 : i32
    %11 = arith.cmpi ne, %10, %c0_i32_9 : i32
    scf.if %11 {
      %c0_10 = arith.constant 0 : index
      %c0_11 = arith.constant 0 : index
      %12 = vector.load %arg7[%c0_10, %c0_11] : memref<16x384xf32, #tpu.memory_space<vmem>>, vector<16x128xf32>
      %c0_12 = arith.constant 0 : index
      %c128 = arith.constant 128 : index
      %13 = vector.load %arg7[%c0_12, %c128] : memref<16x384xf32, #tpu.memory_space<vmem>>, vector<16x128xf32>
      %14 = arith.mulf %12, %13 : vector<16x128xf32>
      %c0_13 = arith.constant 0 : index
      %c256 = arith.constant 256 : index
      %15 = vector.load %arg7[%c0_13, %c256] : memref<16x384xf32, #tpu.memory_space<vmem>>, vector<16x128xf32>
      %16 = arith.mulf %14, %15 : vector<16x128xf32>
      %c0_14 = arith.constant 0 : index
      %c0_15 = arith.constant 0 : index
      %17 = vector.load %arg6[%c0_14, %c0_15] : memref<16x128xf32, #tpu.memory_space<vmem>>, vector<16x128xf32>
      tpu.vector_store %arg6[%c0_14, %c0_15], %16 {strides = array<i32>} : memref<16x128xf32, #tpu.memory_space<vmem>>, vector<16x128xf32>,
    } else {
    }
    return
  }
  func.func @transform_0(%arg0: i32, %arg1: i32, %arg2: i32) -> (i32, i32) {
    %c0_i32 = arith.constant 0 : i32
    return %arg1, %arg2 : i32, i32
  }
  func.func @transform_1(%arg0: i32, %arg1: i32, %arg2: i32) -> (i32, i32) {
    %c0_i32 = arith.constant 0 : i32
    return %arg2, %arg0 : i32, i32
  }
  func.func @transform_2(%arg0: i32, %arg1: i32, %arg2: i32) -> (i32, i32) {
    %c0_i32 = arith.constant 0 : i32
    %c0_i32_0 = arith.constant 0 : i32
    return %c0_i32, %arg0 : i32, i32
  }
  func.func @transform_3(%arg0: i32, %arg1: i32, %arg2: i32) -> (i32, i32) {
    %c0_i32 = arith.constant 0 : i32
    return %arg1, %arg0 : i32, i32
  }
}

</mosaic_0001>

<llo_original>
// kernel: tpu_custom_call.1
$region0: #{tpu_custom_call.1}
  #allocation0 [shape = 'u32[]', space=smem, size = 0x4, offset = 0x4, fixed_abs, tag = 'smem constant byte address 0x4 - core index']
  #allocation1 [shape = 'u32[144,128]{1,0:T(1,128)}', space=vmem, size = 0x12000, scoped, tag = 'internal scratch']
  #allocation2 [shape = 'f32[16,384]{1,0:T(8,128)}', space=vmem, size = 0x6000, scoped, tag = 'scratch operand']
  %s0 = inlined_call_operand.hbm [shape: bf16[16,128], index: 0, kind: input, shape index: {}]
  %s1 = inlined_call_operand.hbm [shape: bf16[128,384], index: 1, kind: input, shape index: {}]
  %s2 = inlined_call_operand.vmem [shape: f32[1,384], index: 2, kind: input, shape index: {}]
  %s3 = inlined_call_operand.hbm [shape: f32[16,128], index: 3, kind: output, shape index: {}]
  %s4 = sld [smem:[#allocation0]]
  $region38: #{tpu_custom_call.1} parent=0
    _
  %s6 = ssub.s32 1, %s4
  %s7 = scalar_select 0, %s6, %s4
  $region1: #{tpu_custom_call.1} parent=0
    #allocation3 [shape = 'u8[4096]{0}', space=vmem, size = 0x1000, scoped, tag = 'input window, operand 0, single buffered']
    #allocation4 [shape = 's32[1]{0}', space=sflag, size = 0x4, scoped, tag = 'scoped memory for tpu_custom_call.1']
    #allocation5 [shape = 's32[1]{0}', space=sflag, size = 0x4, scoped, tag = 'scoped memory for tpu_custom_call.1']
    #allocation6 [shape = 'u8[98304]{0}', space=vmem, size = 0x18000, scoped, tag = 'input window, operand 1, single buffered']
    #allocation7 [shape = 's32[1]{0}', space=sflag, size = 0x4, scoped, tag = 'scoped memory for tpu_custom_call.1']
    #allocation8 [shape = 'u8[8192]{0}', space=vmem, size = 0x2000, scoped, tag = 'output window, operand 0, single buffered']
    %8 = vsyncpa [#allocation4], 0
    %9 = vsyncpa [#allocation7], 0
    %10 = vsyncpa [#allocation5], 0
    // Predicated region
    $region2: #{tpu_custom_call.1} parent=1 // pred_check
      _
    $region3: #{tpu_custom_call.1} parent=1 // pred_check_branch
      %12 = sbr.rel (0) target = $region5
    $region4: #{tpu_custom_call.1} parent=1 // pred_region
      %s14 = ssub.s32 128, 128
      %15 = vsyncadd [#allocation4], %s14
      %s16 = sshll.u32 [#allocation3], 4
      %s17 = int_to_ptr.vmem [resolvable:$true] %s16
      %22 = dma.hbm_to_vmem [thread:$0]  %s0, 128, %s17, [#allocation4], 64, 64, 4
    $region5: #{tpu_custom_call.1} parent=1 // pred_fallthru
      _
    // Predicated region
    $region6: #{tpu_custom_call.1} parent=1 // pred_check
      _
    $region7: #{tpu_custom_call.1} parent=1 // pred_check_branch
      %24 = sbr.rel (0) target = $region9
    $region8: #{tpu_custom_call.1} parent=1 // pred_region
      %s26 = ssub.s32 3072, 3072
      %27 = vsyncadd [#allocation7], %s26
      %s28 = sshll.u32 [#allocation6], 4
      %s29 = int_to_ptr.vmem [resolvable:$true] %s28
      %34 = dma.hbm_to_vmem [thread:$0]  %s1, 3072, %s29, [#allocation7], 192, 192, 12
    $region9: #{tpu_custom_call.1} parent=1 // pred_fallthru
      _
    // Predicated region
    $region10: #{tpu_custom_call.1} parent=1 // pred_check
      _
    $region11: #{tpu_custom_call.1} parent=1 // pred_check_branch
      %36 = sbr.rel (0) target = $region13
    $region12: #{tpu_custom_call.1} parent=1 // pred_region
      _
    $region13: #{tpu_custom_call.1} parent=1 // pred_fallthru
      _
    // Predicated region
    $region14: #{tpu_custom_call.1} parent=1 // pred_check
      _
    $region15: #{tpu_custom_call.1} parent=1 // pred_check_branch
      %38 = sbr.rel (0) target = $region17
    $region16: #{tpu_custom_call.1} parent=1 // pred_region
      %39 = dma.done [#allocation4], 128
    $region17: #{tpu_custom_call.1} parent=1 // pred_fallthru
      _
    // Predicated region
    $region18: #{tpu_custom_call.1} parent=1 // pred_check
      _
    $region19: #{tpu_custom_call.1} parent=1 // pred_check_branch
      %41 = sbr.rel (0) target = $region21
    $region20: #{tpu_custom_call.1} parent=1 // pred_region
      %42 = dma.done [#allocation7], 3072
    $region21: #{tpu_custom_call.1} parent=1 // pred_fallthru
      _
    %p44 = scmp.eq.s32.totalorder 0, 0
    // Predicated region
    $region22: #{tpu_custom_call.1} parent=1 // pred_check
      %p45 = pneg %p44
    $region23: #{tpu_custom_call.1} parent=1 // pred_check_branch
      %47 = sbr.rel (%p45) target = $region25
    $region24: #{tpu_custom_call.1} parent=1 // pred_region
      %v48 = vld [vmem:[%s2] sm:$0x7]
      %v50 = vlaneseq
      %v51 = vshrl.u32 %v50, 7
      %v52 = vsub.s32 0, %v51
      %v53 = vrot.slane %v48, %v52
      %v54 = vlaneseq
      %v55 = vshrl.u32 %v54, 7
      %v56 = vsub.s32 1, %v55
      %v57 = vrot.slane %v48, %v56
      %v58 = vlaneseq
      %v59 = vshrl.u32 %v58, 7
      %v60 = vsub.s32 2, %v59
      %v61 = vrot.slane %v48, %v60
      %65 = vst [vmem:[#allocation2] sm:$0xff] %v53
      %66 = vst [vmem:[#allocation2 + $0x8] sm:$0xff] %v57
      %67 = vst [vmem:[#allocation2 + $0x10] sm:$0xff] %v61
      %68 = vst [vmem:[#allocation2 + $0x18] sm:$0xff] %v53
      %69 = vst [vmem:[#allocation2 + $0x20] sm:$0xff] %v57
      %70 = vst [vmem:[#allocation2 + $0x28] sm:$0xff] %v61
    $region25: #{tpu_custom_call.1} parent=1 // pred_fallthru
      _
    %v71 = vld [vmem:[#allocation2] sm:$0xff]
    %v72 = vld [vmem:[#allocation2 + $0x8] sm:$0xff]
    %v73 = vld [vmem:[#allocation2 + $0x10] sm:$0xff]
    %v74 = vld [vmem:[#allocation2 + $0x18] sm:$0xff]
    %v75 = vld [vmem:[#allocation2 + $0x20] sm:$0xff]
    %v76 = vld [vmem:[#allocation2 + $0x28] sm:$0xff]
    %v77 = vld [vmem:[#allocation3] sm:$0xf]
    %v78 = vld [vmem:[#allocation3 + $0x4] sm:$0xf]
    %v79 = vld [vmem:[#allocation6] sm:$0xff]
    %v80 = vld [vmem:[#allocation6 + $0x8] sm:$0xf]
    %v81 = vld [vmem:[#allocation6 + $0xc] sm:$0xff]
    %v82 = vld [vmem:[#allocation6 + $0x14] sm:$0xf]
    %v83 = vld [vmem:[#allocation6 + $0x18] sm:$0xff]
    %v84 = vld [vmem:[#allocation6 + $0x20] sm:$0xf]
    %v85 = vld [vmem:[#allocation6 + $0x24] sm:$0xff]
    %v86 = vld [vmem:[#allocation6 + $0x2c] sm:$0xf]
    %v87 = vld [vmem:[#allocation6 + $0x30] sm:$0xff]
    %v88 = vld [vmem:[#allocation6 + $0x38] sm:$0xf]
    %v89 = vld [vmem:[#allocation6 + $0x3c] sm:$0xff]
    %v90 = vld [vmem:[#allocation6 + $0x44] sm:$0xf]
    %v91 = vld [vmem:[#allocation6 + $0x48] sm:$0xff]
    %v92 = vld [vmem:[#allocation6 + $0x50] sm:$0xf]
    %v93 = vld [vmem:[#allocation6 + $0x54] sm:$0xff]
    %v94 = vld [vmem:[#allocation6 + $0x5c] sm:$0xf]
    %v95 = vld [vmem:[#allocation6 + $0x60] sm:$0xff]
    %v96 = vld [vmem:[#allocation6 + $0x68] sm:$0xf]
    %v97 = vld [vmem:[#allocation6 + $0x6c] sm:$0xff]
    %v98 = vld [vmem:[#allocation6 + $0x74] sm:$0xf]
    %v99 = vld [vmem:[#allocation6 + $0x78] sm:$0xff]
    %v100 = vld [vmem:[#allocation6 + $0x80] sm:$0xf]
    %v101 = vld [vmem:[#allocation6 + $0x84] sm:$0xff]
    %v102 = vld [vmem:[#allocation6 + $0x8c] sm:$0xf]
    %v103 = vld [vmem:[#allocation6 + $0x90] sm:$0xff]
    %v104 = vld [vmem:[#allocation6 + $0x98] sm:$0xf]
    %v105 = vld [vmem:[#allocation6 + $0x9c] sm:$0xff]
    %v106 = vld [vmem:[#allocation6 + $0xa4] sm:$0xf]
    %v107 = vld [vmem:[#allocation6 + $0xa8] sm:$0xff]
    %v108 = vld [vmem:[#allocation6 + $0xb0] sm:$0xf]
    %v109 = vld [vmem:[#allocation6 + $0xb4] sm:$0xff]
    %v110 = vld [vmem:[#allocation6 + $0xbc] sm:$0xf]
    %v113 = vunpack.c.l.b16 %v77
    %v114 = vunpack.c.l.b16 %v78
    %v115 = vpack.c.b16 %v114, %v113
    %v149 = vunpack.c.l.b16 %v79
    %v150 = vunpack.c.h.b16 %v79
    %v151 = vunpack.c.l.b16 %v80
    %v152 = vunpack.c.l.b16 %v81
    %v153 = vunpack.c.h.b16 %v81
    %v154 = vunpack.c.l.b16 %v82
    %v155 = vunpack.c.l.b16 %v83
    %v156 = vunpack.c.h.b16 %v83
    %v157 = vunpack.c.l.b16 %v84
    %v158 = vunpack.c.l.b16 %v85
    %v159 = vunpack.c.h.b16 %v85
    %v160 = vunpack.c.l.b16 %v86
    %v161 = vunpack.c.l.b16 %v87
    %v162 = vunpack.c.h.b16 %v87
    %v163 = vunpack.c.l.b16 %v88
    %v164 = vunpack.c.l.b16 %v89
    %v165 = vunpack.c.h.b16 %v89
    %v166 = vunpack.c.l.b16 %v90
    %v167 = vunpack.c.l.b16 %v91
    %v168 = vunpack.c.h.b16 %v91
    %v169 = vunpack.c.l.b16 %v92
    %v170 = vunpack.c.l.b16 %v93
    %v171 = vunpack.c.h.b16 %v93
    %v172 = vunpack.c.l.b16 %v94
    %v173 = vunpack.c.l.b16 %v95
    %v174 = vunpack.c.h.b16 %v95
    %v175 = vunpack.c.l.b16 %v96
    %v176 = vunpack.c.l.b16 %v97
    %v177 = vunpack.c.h.b16 %v97
    %v178 = vunpack.c.l.b16 %v98
    %v179 = vunpack.c.l.b16 %v99
    %v180 = vunpack.c.h.b16 %v99
    %v181 = vunpack.c.l.b16 %v100
    %v182 = vunpack.c.l.b16 %v101
    %v183 = vunpack.c.h.b16 %v101
    %v184 = vunpack.c.l.b16 %v102
    %v185 = vunpack.c.l.b16 %v103
    %v186 = vunpack.c.h.b16 %v103
    %v187 = vunpack.c.l.b16 %v104
    %v188 = vunpack.c.l.b16 %v105
    %v189 = vunpack.c.h.b16 %v105
    %v190 = vunpack.c.l.b16 %v106
    %v191 = vunpack.c.l.b16 %v107
    %v192 = vunpack.c.h.b16 %v107
    %v193 = vunpack.c.l.b16 %v108
    %v194 = vunpack.c.l.b16 %v109
    %v195 = vunpack.c.h.b16 %v109
    %v196 = vunpack.c.l.b16 %v110
    %v197 = vpack.c.b16 %v152, %v149
    %v198 = vpack.c.b16 %v153, %v150
    %v199 = vpack.c.b16 %v154, %v151
    %v200 = vpack.c.b16 %v158, %v155
    %v201 = vpack.c.b16 %v159, %v156
    %v202 = vpack.c.b16 %v160, %v157
    %v203 = vpack.c.b16 %v164, %v161
    %v204 = vpack.c.b16 %v165, %v162
    %v205 = vpack.c.b16 %v166, %v163
    %v206 = vpack.c.b16 %v170, %v167
    %v207 = vpack.c.b16 %v171, %v168
    %v208 = vpack.c.b16 %v172, %v169
    %v209 = vpack.c.b16 %v176, %v173
    %v210 = vpack.c.b16 %v177, %v174
    %v211 = vpack.c.b16 %v178, %v175
    %v212 = vpack.c.b16 %v182, %v179
    %v213 = vpack.c.b16 %v183, %v180
    %v214 = vpack.c.b16 %v184, %v181
    %v215 = vpack.c.b16 %v188, %v185
    %v216 = vpack.c.b16 %v189, %v186
    %v217 = vpack.c.b16 %v190, %v187
    %v218 = vpack.c.b16 %v194, %v191
    %v219 = vpack.c.b16 %v195, %v192
    %v220 = vpack.c.b16 %v196, %v193
    %245 = vmatprep.subr.bf16.mxu0 %v198
    %246 = vmatpush1.bf16.msra.mxu0 %v197
    %247 = vmatprep.subr.bf16.mxu0 %v201
    %248 = vmatpush1.bf16.msra.mxu0 %v200
    %249 = vmatprep.subr.bf16.mxu0 %v204
    %250 = vmatpush1.bf16.msra.mxu0 %v203
    %251 = vmatprep.subr.bf16.mxu0 %v207
    %252 = vmatpush1.bf16.msra.mxu0 %v206
    %253 = vmatprep.subr.bf16.mxu0 %v210
    %254 = vmatpush1.bf16.msra.mxu0 %v209
    %255 = vmatprep.subr.bf16.mxu0 %v213
    %256 = vmatpush1.bf16.msra.mxu0 %v212
    %257 = vmatprep.subr.bf16.mxu0 %v216
    %258 = vmatpush1.bf16.msra.mxu0 %v215
    %259 = vmatprep.subr.bf16.mxu0 %v219
    %260 = vmatpush1.bf16.msra.mxu0 %v218
    %261 = vmatprep.subr.bf16.mxu0 0
    %262 = vmatpush1.bf16.msra.mxu0 0
    %263 = vmatprep.subr.bf16.mxu0 0
    %264 = vmatpush1.bf16.msra.mxu0 0
    %265 = vmatprep.subr.bf16.mxu0 0
    %266 = vmatpush1.bf16.msra.mxu0 0
    %267 = vmatprep.subr.bf16.mxu0 0
    %268 = vmatpush1.bf16.msra.mxu0 0
    %269 = vmatprep.subr.bf16.mxu0 0
    %270 = vmatpush1.bf16.msra.mxu0 0
    %271 = vmatprep.subr.bf16.mxu0 0
    %272 = vmatpush1.bf16.msra.mxu0 0
    %273 = vmatprep.subr.bf16.mxu0 0
    %274 = vmatpush1.bf16.msra.mxu0 0
    %275 = vmatprep.subr.bf16.mxu0 0
    %276 = vmatpush1.bf16.msra.mxu0 0
    %277 = vmatprep.mubr.bf16.mxu0 0
    %278 = vmatmul.mubr.bf16.gmra.mrb[0].mxu0 %v115
    %v279 = vpop.f32.mrb[0].mxu0
    %v280 = vadd.f32 0.0, %v279
    %v281 = vpop.f32.mrb[0].mxu0
    %v282 = vadd.f32 0.0, %v281
    %v283 = vpop.f32.mrb[0].mxu0
    %v284 = vadd.f32 0.0, %v283
    %v285 = vpop.f32.mrb[0].mxu0
    %v286 = vadd.f32 0.0, %v285
    %287 = vdwg.mxu0
    %288 = vmatprep.subr.bf16.mxu0 0
    %289 = vmatpush1.bf16.msra.mxu0 %v199
    %290 = vmatprep.subr.bf16.mxu0 0
    %291 = vmatpush1.bf16.msra.mxu0 %v202
    %292 = vmatprep.subr.bf16.mxu0 0
    %293 = vmatpush1.bf16.msra.mxu0 %v205
    %294 = vmatprep.subr.bf16.mxu0 0
    %295 = vmatpush1.bf16.msra.mxu0 %v208
    %296 = vmatprep.subr.bf16.mxu0 0
    %297 = vmatpush1.bf16.msra.mxu0 %v211
    %298 = vmatprep.subr.bf16.mxu0 0
    %299 = vmatpush1.bf16.msra.mxu0 %v214
    %300 = vmatprep.subr.bf16.mxu0 0
    %301 = vmatpush1.bf16.msra.mxu0 %v217
    %302 = vmatprep.subr.bf16.mxu0 0
    %303 = vmatpush1.bf16.msra.mxu0 %v220
    %304 = vmatprep.subr.bf16.mxu0 0
    %305 = vmatpush1.bf16.msra.mxu0 0
    %306 = vmatprep.subr.bf16.mxu0 0
    %307 = vmatpush1.bf16.msra.mxu0 0
    %308 = vmatprep.subr.bf16.mxu0 0
    %309 = vmatpush1.bf16.msra.mxu0 0
    %310 = vmatprep.subr.bf16.mxu0 0
    %311 = vmatpush1.bf16.msra.mxu0 0
    %312 = vmatprep.subr.bf16.mxu0 0
    %313 = vmatpush1.bf16.msra.mxu0 0
    %314 = vmatprep.subr.bf16.mxu0 0
    %315 = vmatpush1.bf16.msra.mxu0 0
    %316 = vmatprep.subr.bf16.mxu0 0
    %317 = vmatpush1.bf16.msra.mxu0 0
    %318 = vmatprep.subr.bf16.mxu0 0
    %319 = vmatpush1.bf16.msra.mxu0 0
    %320 = vmatprep.mubr.bf16.mxu0 0
    %321 = vmatmul.mubr.bf16.gmra.mrb[0].mxu0 %v115
    %v322 = vpop.f32.mrb[0].mxu0
    %v323 = vadd.f32 0.0, %v322
    %v324 = vpop.f32.mrb[0].mxu0
    %v325 = vpop.f32.mrb[0].mxu0
    %v326 = vadd.f32 0.0, %v325
    %v327 = vpop.f32.mrb[0].mxu0
    %328 = vdwg.mxu0
    %v329 = vadd.f32 %v71, %v280
    %v330 = vadd.f32 %v72, %v282
    %v331 = vadd.f32 %v73, %v323
    %v332 = vadd.f32 %v74, %v284
    %v333 = vadd.f32 %v75, %v286
    %v334 = vadd.f32 %v76, %v326
    %335 = vst [vmem:[#allocation2] sm:$0xff] %v329
    %336 = vst [vmem:[#allocation2 + $0x8] sm:$0xff] %v330
    %337 = vst [vmem:[#allocation2 + $0x10] sm:$0xff] %v331
    %338 = vst [vmem:[#allocation2 + $0x18] sm:$0xff] %v332
    %339 = vst [vmem:[#allocation2 + $0x20] sm:$0xff] %v333
    %340 = vst [vmem:[#allocation2 + $0x28] sm:$0xff] %v334
    // Predicated region
    $region26: #{tpu_custom_call.1} parent=1 // pred_check
      %p341 = pneg %p44
    $region27: #{tpu_custom_call.1} parent=1 // pred_check_branch
      %343 = sbr.rel (%p341) target = $region29
    $region28: #{tpu_custom_call.1} parent=1 // pred_region
      %v344 = vld [vmem:[#allocation2] sm:$0xff]
      %v345 = vld [vmem:[#allocation2 + $0x18] sm:$0xff]
      %v346 = vld [vmem:[#allocation2 + $0x8] sm:$0xff]
      %v347 = vld [vmem:[#allocation2 + $0x20] sm:$0xff]
      %v348 = vmul.f32 %v344, %v346
      %v349 = vmul.f32 %v345, %v347
      %v350 = vld [vmem:[#allocation2 + $0x10] sm:$0xff]
      %v351 = vld [vmem:[#allocation2 + $0x28] sm:$0xff]
      %v352 = vmul.f32 %v348, %v350
      %v353 = vmul.f32 %v349, %v351
      %354 = vst [vmem:[#allocation8] sm:$0xff] %v352
      %355 = vst [vmem:[#allocation8 + $0x8] sm:$0xff] %v353
    $region29: #{tpu_custom_call.1} parent=1 // pred_fallthru
      _
    // Predicated region
    $region30: #{tpu_custom_call.1} parent=1 // pred_check
      _
    $region31: #{tpu_custom_call.1} parent=1 // pred_check_branch
      %357 = sbr.rel (0) target = $region33
    $region32: #{tpu_custom_call.1} parent=1 // pred_region
      %s359 = ssub.s32 256, 256
      %360 = vsyncadd [#allocation5], %s359
      %s361 = sshll.u32 [#allocation8], 4
      %s362 = int_to_ptr.vmem [resolvable:$true] %s361
      %367 = dma.vmem_to_hbm [thread:$0]  %s362, 256, %s3, [#allocation5], 128, 128, 8
    $region33: #{tpu_custom_call.1} parent=1 // pred_fallthru
      _
    // Predicated region
    $region34: #{tpu_custom_call.1} parent=1 // pred_check
      _
    $region35: #{tpu_custom_call.1} parent=1 // pred_check_branch
      %369 = sbr.rel (0) target = $region37
    $region36: #{tpu_custom_call.1} parent=1 // pred_region
      %370 = dma.done [#allocation5], 256
    $region37: #{tpu_custom_call.1} parent=1 // pred_fallthru
      _
    %371 = vsyncpa [#allocation4], 1
    %372 = vsyncpa [#allocation7], 1
    %373 = vsyncpa [#allocation5], 1

</llo_original>
